<compile_context>
chip_gen: v5e
topology: v5e:2x2
jax: 0.10.0
libtpu: 0.0.40
codegen_flags: <defaults>
</compile_context>

<pallas_src>
import functools

import jax
import jax.numpy as jnp
from jax.experimental import pallas as pl
from jax.experimental.pallas import tpu as pltpu

_LANE = 128
_SUBLANE = 16       # bf16 sublane packing -> batch tiles are multiples of 16
_MAX_TB = 2048      # batch-tile cap (double-buffered VMEM stays tiny)


def _round_up(n, m):
    return ((n + m - 1) // m) * m


def _pick_batch_tile(batch):
    """>=2 grid steps whenever batch allows (v7x megacore), capped at _MAX_TB."""
    b16 = _round_up(max(batch, 1), _SUBLANE)
    if b16 <= _SUBLANE:
        return b16
    return min(_MAX_TB, _round_up((b16 + 1) // 2, _SUBLANE))


def _mlp_kernel(x_ref, w1_ref, w2_ref, w3_ref, b_ref, o_ref, *, h1, h2, out_pad):
    # f32 -> bf16 cast of x happens in-kernel (cheap VPU work, no wrapper pass).
    x = x_ref[...].astype(jnp.bfloat16)

    # Layer 1: Linear + ReLU   (dropout = identity in eval mode)
    h = jnp.dot(x, w1_ref[...], preferred_element_type=jnp.float32)
    h = jnp.maximum(h + b_ref[0:1, :h1], 0.0)

    # Layer 2: Linear + ReLU   (dropout = identity in eval mode)
    h = jnp.dot(h.astype(jnp.bfloat16), w2_ref[...],
                preferred_element_type=jnp.float32)
    h = jnp.maximum(h + b_ref[1:2, :h2], 0.0)

    # Layer 3: Linear (output columns padded to 128; pad bias = -1e30)
    logits = jnp.dot(h.astype(jnp.bfloat16), w3_ref[...],
                     preferred_element_type=jnp.float32)
    logits = logits + b_ref[2:3, :out_pad]

    # Numerically stable softmax over the padded last dim; pad columns carry
    # -1e30 logits so exp(...) == 0 -> exactly zero probability.
    m = jnp.max(logits, axis=-1, keepdims=True)
    e = jnp.exp(logits - m)
    denom = jnp.sum(e, axis=-1, keepdims=True)
    o_ref[...] = (e * pl.reciprocal(denom, approx=True)).astype(o_ref.dtype)


def make_baseline_forward(w1, b1, w2, b2, w3, b3):
    """Setup-time work done once: pad layer-3 to a 128-lane slab, fuse biases,
    pre-cast weights to bf16. Returns a jitted forward(x) -> [B, out_dim] f32."""
    in_dim, h1 = w1.shape
    h2 = w2.shape[1]
    out_dim = w3.shape[1]
    out_pad = _round_up(out_dim, _LANE)
    bias_w = max(h1, h2, out_pad)

    # Lane-dense layer-3: zero weight columns on the padding.
    w3p = jnp.zeros((h2, out_pad), jnp.float32).at[:, :out_dim].set(w3)

    # Fused f32 bias slab (one resident operand instead of three); the -1e30
    # fill is what makes the layer-3 pad columns vanish under softmax.
    bias = jnp.full((3, bias_w), -1e30, jnp.float32)
    bias = bias.at[0, :h1].set(jnp.ravel(b1))
    bias = bias.at[1, :h2].set(jnp.ravel(b2))
    bias = bias.at[2, :out_dim].set(jnp.ravel(b3))

    # bf16 MXU inputs (accumulation stays f32 inside the kernel).
    w1b = w1.astype(jnp.bfloat16)
    w2b = w2.astype(jnp.bfloat16)
    w3b = w3p.astype(jnp.bfloat16)

    kernel = functools.partial(_mlp_kernel, h1=h1, h2=h2, out_pad=out_pad)

    @jax.jit
    def forward(x):
        batch = x.shape[0]
        tb = _pick_batch_tile(batch)
        n_blocks = pl.cdiv(batch, tb)
        b_padded = n_blocks * tb
        x_in = x if b_padded == batch else jnp.pad(x, ((0, b_padded - batch), (0, 0)))

        out = pl.pallas_call(
            kernel,
            out_shape=jax.ShapeDtypeStruct((b_padded, out_pad), jnp.bfloat16),
            grid=(n_blocks,),
            in_specs=[
                pl.BlockSpec((tb, in_dim), lambda i: (i, 0)),    # x: batch-tiled
                pl.BlockSpec((in_dim, h1), lambda i: (0, 0)),    # weights/bias
                pl.BlockSpec((h1, h2), lambda i: (0, 0)),        #   stay VMEM-
                pl.BlockSpec((h2, out_pad), lambda i: (0, 0)),   #   resident
                pl.BlockSpec((3, bias_w), lambda i: (0, 0)),
            ],
            out_specs=pl.BlockSpec((tb, out_pad), lambda i: (i, 0)),
            compiler_params=pltpu.CompilerParams(
                dimension_semantics=("parallel",)),
        )(x_in, w1b, w2b, w3b, bias)

        return out[:batch, :out_dim].astype(jnp.float32)

    return forward


def _init_linear(key, fan_in, fan_out):
    """Deterministic init mimicking nn.Linear's U(-1/sqrt(fan_in), ...)."""
    kw, kb = jax.random.split(key)
    bound = 1.0 / jnp.sqrt(jnp.float32(fan_in))
    w = jax.random.uniform(kw, (fan_in, fan_out), jnp.float32, -bound, bound)
    b = jax.random.uniform(kb, (1, fan_out), jnp.float32, -bound, bound)
    return w, b


def _reference(x, w1, b1, w2, b2, w3, b3):
    h = jnp.maximum(x @ w1 + b1, 0.0)
    h = jnp.maximum(h @ w2 + b2, 0.0)
    logits = h @ w3 + b3
    return jax.nn.softmax(logits, axis=-1)


if __name__ == "__main__":
    # Config consistent with the module: in_dim=32, n_hidden_1=64,
    # n_hidden_2=32, out_dim=3 ("possibility of three class").
    batch, in_dim, h1, h2, out_dim = 8, 32, 64, 32, 3

    key = jax.random.PRNGKey(0)
    kx, kx2, k1, k2, k3 = jax.random.split(key, 5)

    x = jax.random.normal(kx, (batch, in_dim), jnp.float32)
    w1, b1 = _init_linear(k1, in_dim, h1)
    w2, b2 = _init_linear(k2, h1, h2)
    w3, b3 = _init_linear(k3, h2, out_dim)

    forward = make_baseline_forward(w1, b1, w2, b2, w3, b3)

    out = jax.block_until_ready(forward(x))
    ref = _reference(x, w1, b1, w2, b2, w3, b3)
    assert out.shape == (batch, out_dim)
    # bf16 matmuls, bf16 output + approximate reciprocal -> loose tolerance.
    assert jnp.allclose(out, ref, atol=2e-2, rtol=2e-2), "mismatch vs reference"
    assert jnp.allclose(jnp.sum(out, axis=-1), 1.0, atol=1e-2)

    # Second shape: exercises the multi-block (megacore) path + batch padding.
    x2 = jax.random.normal(kx2, (48, in_dim), jnp.float32)
    out2 = jax.block_until_ready(forward(x2))
    ref2 = _reference(x2, w1, b1, w2, b2, w3, b3)
    assert out2.shape == (48, out_dim)
    assert jnp.allclose(out2, ref2, atol=2e-2, rtol=2e-2), "mismatch vs ref (B=48)"

    print("KERNEL_OK")
</pallas_src>

<mosaic_0001>
module attributes {stable_mosaic.version = 11 : i64} {
  func.func @_mlp_kernel(%arg0: i32, %arg1: memref<16x32xf32, #tpu.memory_space<vmem>>, %arg2: memref<32x64xbf16, #tpu.memory_space<vmem>>, %arg3: memref<64x32xbf16, #tpu.memory_space<vmem>>, %arg4: memref<32x128xbf16, #tpu.memory_space<vmem>>, %arg5: memref<3x128xf32, #tpu.memory_space<vmem>>, %arg6: memref<16x128xbf16, #tpu.memory_space<vmem>>) attributes {dimension_semantics = [#tpu.dimension_semantics<parallel>], iteration_bounds = array<i64: 1>, scalar_prefetch = 0 : i64, scratch_operands = 0 : i64, tpu.core_type = #tpu.core_type<tc>, window_params = [{transform_indices = @transform_0, window_bounds = array<i64: 16, 32>}, {pipeline_mode = #tpu.pipeline_mode<synchronous>, transform_indices = @transform_1, window_bounds = array<i64: 32, 64>}, {pipeline_mode = #tpu.pipeline_mode<synchronous>, transform_indices = @transform_2, window_bounds = array<i64: 64, 32>}, {pipeline_mode = #tpu.pipeline_mode<synchronous>, transform_indices = @transform_3, window_bounds = array<i64: 32, 128>}, {pipeline_mode = #tpu.pipeline_mode<synchronous>, transform_indices = @transform_4, window_bounds = array<i64: 3, 128>}, {transform_indices = @transform_5, window_bounds = array<i64: 16, 128>}]} {
    %c0 = arith.constant 0 : index
    %c0_0 = arith.constant 0 : index
    %0 = vector.load %arg1[%c0, %c0_0] : memref<16x32xf32, #tpu.memory_space<vmem>>, vector<16x32xf32>
    %1 = arith.truncf %0 : vector<16x32xf32> to vector<16x32xbf16>
    %c0_1 = arith.constant 0 : index
    %c0_2 = arith.constant 0 : index
    %2 = vector.load %arg2[%c0_1, %c0_2] : memref<32x64xbf16, #tpu.memory_space<vmem>>, vector<32x64xbf16>
    %cst = arith.constant dense<0.000000e+00> : vector<16x64xf32>
    %3 = tpu.matmul %1, %2, %cst {dimension_numbers = #tpu.dot_dimension_numbers<[1], [0], [0], [1], [0, 0, 1, 1], [], []>} : vector<16x32xbf16>, vector<32x64xbf16>, vector<16x64xf32> -> vector<16x64xf32>
    %c0_3 = arith.constant 0 : index
    %c0_4 = arith.constant 0 : index
    %4 = vector.load %arg5[%c0_3, %c0_4] : memref<3x128xf32, #tpu.memory_space<vmem>>, vector<1x64xf32>
    %5 = vector.broadcast %4 : vector<1x64xf32> to vector<16x64xf32>
    %6 = arith.addf %3, %5 : vector<16x64xf32>
    %cst_5 = arith.constant 0.000000e+00 : f32
    %7 = vector.broadcast %cst_5 : f32 to vector<16x64xf32>
    %8 = arith.maximumf %6, %7 : vector<16x64xf32>
    %9 = arith.truncf %8 : vector<16x64xf32> to vector<16x64xbf16>
    %c0_6 = arith.constant 0 : index
    %c0_7 = arith.constant 0 : index
    %10 = vector.load %arg3[%c0_6, %c0_7] : memref<64x32xbf16, #tpu.memory_space<vmem>>, vector<64x32xbf16>
    %cst_8 = arith.constant dense<0.000000e+00> : vector<16x32xf32>
    %11 = tpu.matmul %9, %10, %cst_8 {dimension_numbers = #tpu.dot_dimension_numbers<[1], [0], [0], [1], [0, 0, 1, 1], [], []>} : vector<16x64xbf16>, vector<64x32xbf16>, vector<16x32xf32> -> vector<16x32xf32>
    %c1 = arith.constant 1 : index
    %c0_9 = arith.constant 0 : index
    %12 = vector.load %arg5[%c1, %c0_9] : memref<3x128xf32, #tpu.memory_space<vmem>>, vector<1x32xf32>
    %13 = vector.broadcast %12 : vector<1x32xf32> to vector<16x32xf32>
    %14 = arith.addf %11, %13 : vector<16x32xf32>
    %cst_10 = arith.constant 0.000000e+00 : f32
    %15 = vector.broadcast %cst_10 : f32 to vector<16x32xf32>
    %16 = arith.maximumf %14, %15 : vector<16x32xf32>
    %17 = arith.truncf %16 : vector<16x32xf32> to vector<16x32xbf16>
    %c0_11 = arith.constant 0 : index
    %c0_12 = arith.constant 0 : index
    %18 = vector.load %arg4[%c0_11, %c0_12] : memref<32x128xbf16, #tpu.memory_space<vmem>>, vector<32x128xbf16>
    %cst_13 = arith.constant dense<0.000000e+00> : vector<16x128xf32>
    %19 = tpu.matmul %17, %18, %cst_13 {dimension_numbers = #tpu.dot_dimension_numbers<[1], [0], [0], [1], [0, 0, 1, 1], [], []>} : vector<16x32xbf16>, vector<32x128xbf16>, vector<16x128xf32> -> vector<16x128xf32>
    %c2 = arith.constant 2 : index
    %c0_14 = arith.constant 0 : index
    %20 = vector.load %arg5[%c2, %c0_14] : memref<3x128xf32, #tpu.memory_space<vmem>>, vector<1x128xf32>
    %21 = vector.broadcast %20 : vector<1x128xf32> to vector<16x128xf32>
    %22 = arith.addf %19, %21 : vector<16x128xf32>
    %cst_15 = arith.constant dense<0xFF800000> : vector<16xf32>
    %23 = vector.multi_reduction <maximumf>, %22, %cst_15 [1] : vector<16x128xf32> to vector<16xf32>
    %24 = vector.shape_cast %23 : vector<16xf32> to vector<16x1xf32>
    %25 = vector.broadcast %24 : vector<16x1xf32> to vector<16x128xf32>
    %26 = arith.subf %22, %25 : vector<16x128xf32>
    %27 = math.exp %26 : vector<16x128xf32>
    %cst_16 = arith.constant dense<0.000000e+00> : vector<16xf32>
    %28 = vector.multi_reduction <add>, %27, %cst_16 [1] : vector<16x128xf32> to vector<16xf32>
    %29 = vector.shape_cast %28 : vector<16xf32> to vector<16x1xf32>
    %30 = tpu.reciprocal %29 {approx = true} : vector<16x1xf32> -> vector<16x1xf32>
    %31 = vector.broadcast %30 : vector<16x1xf32> to vector<16x128xf32>
    %32 = arith.mulf %27, %31 : vector<16x128xf32>
    %33 = arith.truncf %32 : vector<16x128xf32> to vector<16x128xbf16>
    %c0_17 = arith.constant 0 : index
    %c0_18 = arith.constant 0 : index
    %34 = vector.load %arg6[%c0_17, %c0_18] : memref<16x128xbf16, #tpu.memory_space<vmem>>, vector<16x128xbf16>
    tpu.vector_store %arg6[%c0_17, %c0_18], %33 {strides = array<i32>} : memref<16x128xbf16, #tpu.memory_space<vmem>>, vector<16x128xbf16>,
    return
  }
  func.func @transform_0(%arg0: i32) -> (i32, i32) {
    %c0_i32 = arith.constant 0 : i32
    %c0_i32_0 = arith.constant 0 : i32
    return %arg0, %c0_i32 : i32, i32
  }
  func.func @transform_1(%arg0: i32) -> (i32, i32) {
    %c0_i32 = arith.constant 0 : i32
    %c0_i32_0 = arith.constant 0 : i32
    %c0_i32_1 = arith.constant 0 : i32
    return %c0_i32, %c0_i32_0 : i32, i32
  }
  func.func @transform_2(%arg0: i32) -> (i32, i32) {
    %c0_i32 = arith.constant 0 : i32
    %c0_i32_0 = arith.constant 0 : i32
    %c0_i32_1 = arith.constant 0 : i32
    return %c0_i32, %c0_i32_0 : i32, i32
  }
  func.func @transform_3(%arg0: i32) -> (i32, i32) {
    %c0_i32 = arith.constant 0 : i32
    %c0_i32_0 = arith.constant 0 : i32
    %c0_i32_1 = arith.constant 0 : i32
    return %c0_i32, %c0_i32_0 : i32, i32
  }
  func.func @transform_4(%arg0: i32) -> (i32, i32) {
    %c0_i32 = arith.constant 0 : i32
    %c0_i32_0 = arith.constant 0 : i32
    %c0_i32_1 = arith.constant 0 : i32
    return %c0_i32, %c0_i32_0 : i32, i32
  }
  func.func @transform_5(%arg0: i32) -> (i32, i32) {
    %c0_i32 = arith.constant 0 : i32
    %c0_i32_0 = arith.constant 0 : i32
    return %arg0, %c0_i32 : i32, i32
  }
}

</mosaic_0001>

<llo_original>
// kernel: forward.1
$region0: #{forward.1}
  #allocation0 [shape = 'u32[]', space=smem, size = 0x4, offset = 0x4, fixed_abs, tag = 'smem constant byte address 0x4 - core index']
  #allocation1 [shape = 'u32[72,128]{1,0:T(1,128)}', space=vmem, size = 0x9000, scoped, tag = 'internal scratch']
  %s0 = inlined_call_operand.vmem [shape: f32[16,32], index: 0, kind: input, shape index: {}]
  %s1 = inlined_call_operand.hbm [shape: bf16[32,64], index: 1, kind: input, shape index: {}]
  %s2 = inlined_call_operand.hbm [shape: bf16[64,32], index: 2, kind: input, shape index: {}]
  %s3 = inlined_call_operand.vmem [shape: bf16[32,128], index: 3, kind: input, shape index: {}]
  %s4 = inlined_call_operand.vmem [shape: f32[3,128], index: 4, kind: input, shape index: {}]
  %s5 = inlined_call_operand.vmem [shape: bf16[16,128], index: 5, kind: output, shape index: {}]
  %s6 = sld [smem:[#allocation0]]
  $region38: #{forward.1} parent=0
    _
  %s8 = ssub.s32 1, %s6
  %s9 = scalar_select 0, %s8, %s6
  $region1: #{forward.1} parent=0
    #allocation2 [shape = 'u8[8192]{0}', space=vmem, size = 0x2000, scoped, tag = 'input window, operand 1, single buffered']
    #allocation3 [shape = 's32[1]{0}', space=sflag, size = 0x4, scoped, tag = 'scoped memory for forward.1']
    #allocation4 [shape = 'u8[16384]{0}', space=vmem, size = 0x4000, scoped, tag = 'input window, operand 2, single buffered']
    #allocation5 [shape = 's32[1]{0}', space=sflag, size = 0x4, scoped, tag = 'scoped memory for forward.1']
    %10 = vsyncpa [#allocation3], 0
    %11 = vsyncpa [#allocation5], 0
    // Predicated region
    $region2: #{forward.1} parent=1 // pred_check
      _
    $region3: #{forward.1} parent=1 // pred_check_branch
      %13 = sbr.rel (0) target = $region5
    $region4: #{forward.1} parent=1 // pred_region
      _
    $region5: #{forward.1} parent=1 // pred_fallthru
      _
    // Predicated region
    $region6: #{forward.1} parent=1 // pred_check
      _
    $region7: #{forward.1} parent=1 // pred_check_branch
      %15 = sbr.rel (0) target = $region9
    $region8: #{forward.1} parent=1 // pred_region
      %17 = vsyncadd [#allocation3], 0
      %s18 = sshll.u32 %s1, 4
      %s19 = int_to_ptr.hbm [resolvable:$true] %s18
      %s20 = sshll.u32 [#allocation2], 4
      %s21 = int_to_ptr.vmem [resolvable:$true] %s20
      %26 = dma.hbm_to_vmem [thread:$0]  %s19, 256, %s21, [#allocation3], 64, 64, 4
    $region9: #{forward.1} parent=1 // pred_fallthru
      _
    // Predicated region
    $region10: #{forward.1} parent=1 // pred_check
      _
    $region11: #{forward.1} parent=1 // pred_check_branch
      %28 = sbr.rel (0) target = $region13
    $region12: #{forward.1} parent=1 // pred_region
      %30 = vsyncadd [#allocation5], 0
      %s31 = sshll.u32 %s2, 4
      %s32 = int_to_ptr.hbm [resolvable:$true] %s31
      %s33 = sshll.u32 [#allocation4], 4
      %s34 = int_to_ptr.vmem [resolvable:$true] %s33
      %39 = dma.hbm_to_vmem [thread:$0]  %s32, 512, %s34, [#allocation5], 64, 64, 4
    $region13: #{forward.1} parent=1 // pred_fallthru
      _
    // Predicated region
    $region14: #{forward.1} parent=1 // pred_check
      _
    $region15: #{forward.1} parent=1 // pred_check_branch
      %41 = sbr.rel (0) target = $region17
    $region16: #{forward.1} parent=1 // pred_region
      _
    $region17: #{forward.1} parent=1 // pred_fallthru
      _
    // Predicated region
    $region18: #{forward.1} parent=1 // pred_check
      _
    $region19: #{forward.1} parent=1 // pred_check_branch
      %43 = sbr.rel (0) target = $region21
    $region20: #{forward.1} parent=1 // pred_region
      _
    $region21: #{forward.1} parent=1 // pred_fallthru
      _
    // Predicated region
    $region22: #{forward.1} parent=1 // pred_check
      _
    $region23: #{forward.1} parent=1 // pred_check_branch
      %45 = sbr.rel (0) target = $region25
    $region24: #{forward.1} parent=1 // pred_region
      %47 = dma.done [#allocation3], 256
    $region25: #{forward.1} parent=1 // pred_fallthru
      _
    // Predicated region
    $region26: #{forward.1} parent=1 // pred_check
      _
    $region27: #{forward.1} parent=1 // pred_check_branch
      %49 = sbr.rel (0) target = $region29
    $region28: #{forward.1} parent=1 // pred_region
      %51 = dma.done [#allocation5], 512
    $region29: #{forward.1} parent=1 // pred_fallthru
      _
    %v53 = vld [vmem:[%s0] sm:$0xff]
    %v54 = vld [vmem:[%s0 + $0x8] sm:$0xff]
    %v55 = vpack.c.bf16 %v54, %v53
    %v56 = vld [vmem:[#allocation2] sm:$0xf]
    %v57 = vld [vmem:[#allocation2 + $0x4] sm:$0xf]
    %v58 = vld [vmem:[#allocation2 + $0x8] sm:$0xf]
    %v59 = vld [vmem:[#allocation2 + $0xc] sm:$0xf]
    %v60 = vld [vmem:[%s4] sm:$0x1]
    %v61 = vperm.slane %v60, 0
    %v66 = vunpack.c.l.b16 %v56
    %v67 = vunpack.c.l.b16 %v57
    %v68 = vunpack.c.l.b16 %v58
    %v69 = vunpack.c.l.b16 %v59
    %v70 = vpack.c.b16 %v67, %v66
    %v71 = vpack.c.b16 %v69, %v68
    %vm74 = vcmask 261120
    %v76 = vsel %vm74, %v55, 0
    %78 = vmatpush.bf16.msra.mxu0 0
    %79 = vmatpush.bf16.msra.mxu0 0
    %80 = vmatpush.bf16.msra.mxu0 0
    %81 = vmatpush.bf16.msra.mxu0 0
    %82 = vmatpush.bf16.msra.mxu0 0
    %83 = vmatpush.bf16.msra.mxu0 0
    %84 = vmatpush.bf16.msra.mxu0 %v71
    %85 = vmatpush.bf16.msra.mxu0 %v70
    %86 = vmatmul.bf16.gmra.mxu0 %v76
    %v87 = vpop.f32.mrf.mxu0
    %v88 = vadd.f32 %v61, %v87
    %v89 = vpop.f32.mrf.mxu0
    %v90 = vadd.f32 %v61, %v89
    %91 = vdwg.mxu0
    %v92 = vmax.f32 %v88, 0.0
    %v93 = vmax.f32 %v90, 0.0
    %v94 = vpack.c.bf16 %v93, %v92
    %v95 = vld [vmem:[#allocation4] sm:$0xf]
    %v96 = vld [vmem:[#allocation4 + $0x4] sm:$0xf]
    %v97 = vld [vmem:[#allocation4 + $0x8] sm:$0xf]
    %v98 = vld [vmem:[#allocation4 + $0xc] sm:$0xf]
    %v99 = vld [vmem:[#allocation4 + $0x10] sm:$0xf]
    %v100 = vld [vmem:[#allocation4 + $0x14] sm:$0xf]
    %v101 = vld [vmem:[#allocation4 + $0x18] sm:$0xf]
    %v102 = vld [vmem:[#allocation4 + $0x1c] sm:$0xf]
    %v103 = vld [vmem:[%s4 + $0x1] sm:$0x1]
    %v104 = vperm.slane %v103, 0
    %v113 = vunpack.c.l.b16 %v95
    %v114 = vunpack.c.l.b16 %v96
    %v115 = vunpack.c.l.b16 %v97
    %v116 = vunpack.c.l.b16 %v98
    %v117 = vunpack.c.l.b16 %v99
    %v118 = vunpack.c.l.b16 %v100
    %v119 = vunpack.c.l.b16 %v101
    %v120 = vunpack.c.l.b16 %v102
    %v121 = vpack.c.b16 %v114, %v113
    %v122 = vpack.c.b16 %v116, %v115
    %v123 = vpack.c.b16 %v118, %v117
    %v124 = vpack.c.b16 %v120, %v119
    %vm129 = vcmask 523264
    %v131 = vsel %vm129, %v94, 0
    %133 = vmatpush.bf16.msra.mxu0 0
    %134 = vmatpush.bf16.msra.mxu0 0
    %135 = vmatpush.bf16.msra.mxu0 0
    %136 = vmatpush.bf16.msra.mxu0 0
    %137 = vmatpush.bf16.msra.mxu0 %v124
    %138 = vmatpush.bf16.msra.mxu0 %v123
    %139 = vmatpush.bf16.msra.mxu0 %v122
    %140 = vmatpush.bf16.msra.mxu0 %v121
    %141 = vmatmul.bf16.gmra.mxu0 %v131
    %v142 = vpop.f32.mrf.mxu0
    %v143 = vadd.f32 %v104, %v142
    %v144 = vpop.f32.mrf.mxu0
    %v145 = vadd.f32 %v104, %v144
    %146 = vdwg.mxu0
    %v147 = vmax.f32 %v143, 0.0
    %v148 = vmax.f32 %v145, 0.0
    %v149 = vpack.c.bf16 %v148, %v147
    %v150 = vld [vmem:[%s3] sm:$0xf]
    %v151 = vld [vmem:[%s3 + $0x4] sm:$0xf]
    %v152 = vld [vmem:[%s3 + $0x8] sm:$0xf]
    %v153 = vld [vmem:[%s3 + $0xc] sm:$0xf]
    %v154 = vld [vmem:[%s4 + $0x2] sm:$0x1]
    %v155 = vperm.slane %v154, 0
    %v160 = vunpack.c.l.b16 %v150
    %v161 = vunpack.c.l.b16 %v151
    %v162 = vunpack.c.l.b16 %v152
    %v163 = vunpack.c.l.b16 %v153
    %v164 = vpack.c.b16 %v161, %v160
    %v165 = vpack.c.b16 %v163, %v162
    %v169 = vsel %vm74, %v149, 0
    %171 = vmatpush.bf16.msra.mxu0 0
    %172 = vmatpush.bf16.msra.mxu0 0
    %173 = vmatpush.bf16.msra.mxu0 0
    %174 = vmatpush.bf16.msra.mxu0 0
    %175 = vmatpush.bf16.msra.mxu0 0
    %176 = vmatpush.bf16.msra.mxu0 0
    %177 = vmatpush.bf16.msra.mxu0 %v165
    %178 = vmatpush.bf16.msra.mxu0 %v164
    %179 = vmatmul.bf16.gmra.mxu0 %v169
    %v180 = vpop.f32.mrf.mxu0
    %v181 = vadd.f32 %v155, %v180
    %v182 = vpop.f32.mrf.mxu0
    %v183 = vadd.f32 %v155, %v182
    %184 = vdwg.mxu0
    %185 = vmax.xlane.f32.xlu0 %v181
    %v186 = vpop.xlane.xlu0 %185
    %187 = vmax.xlane.f32.xlu0 %v183
    %v188 = vpop.xlane.xlu0 %187
    %v189 = vsub.f32 %v181, %v186
    %v190 = vsub.f32 %v183, %v188
    %v191 = vmul.f32 %v189, 1.442695
    %v192 = vpow.pop %v191
    %v193 = vmul.f32 %v190, 1.442695
    %v194 = vpow.pop %v193
    %195 = vadd.xlane.f32.xlu0 %v192
    %v196 = vpop.xlane.xlu0 %195
    %197 = vadd.xlane.f32.xlu0 %v194
    %v198 = vpop.xlane.xlu0 %197
    %v199 = vrcp.pop %v196
    %v200 = vrcp.pop %v198
    %v201 = vmul.f32 %v192, %v199
    %v202 = vmul.f32 %v194, %v200
    %v203 = vpack.c.bf16 %v201, %v201
    %v204 = vpack.c.bf16 %v202, %v202
    %205 = vst [vmem:[%s5] sm:$0xf] %v203
    %206 = vst [vmem:[%s5 + $0x4] sm:$0xf] %v204
    // Predicated region
    $region30: #{forward.1} parent=1 // pred_check
      _
    $region31: #{forward.1} parent=1 // pred_check_branch
      %208 = sbr.rel (0) target = $region33
    $region32: #{forward.1} parent=1 // pred_region
      _
    $region33: #{forward.1} parent=1 // pred_fallthru
      _
    // Predicated region
    $region34: #{forward.1} parent=1 // pred_check
      _
    $region35: #{forward.1} parent=1 // pred_check_branch
      %210 = sbr.rel (0) target = $region37
    $region36: #{forward.1} parent=1 // pred_region
      _
    $region37: #{forward.1} parent=1 // pred_fallthru
      _
    %211 = vsyncpa [#allocation3], 1
    %212 = vsyncpa [#allocation5], 1

</llo_original>
